<compile_context>
chip_gen: v7x
topology: tpu7x:2x2x1
jax: 0.10.0
libtpu: 0.0.40
codegen_flags: <defaults>
</compile_context>

<pallas_src>
import jax
import jax.numpy as jnp
from jax.experimental import pallas as pl
from jax.experimental.pallas import tpu as pltpu


def _maxpool_kernel(xw_ref, o_ref):
    # xw_ref: (pool_size, block_rows, tile_out)   o_ref: (block_rows, tile_out)
    p = xw_ref.shape[0]                      # static
    acc = xw_ref[0]
    for k in range(1, p):                    # static unroll -> pure VPU max
        acc = jnp.maximum(acc, xw_ref[k])
    o_ref[...] = acc.astype(o_ref.dtype)


def max_pool1d(x, pool_size=2, padding="same", *, block_rows=512, tile_out=1024):
    """Equivalent of MaxPool(pool_size, padding).forward(x) for x of shape (N, C, L)."""
    N, C, L = x.shape
    p = pool_size

    if padding == "same":
        pad_total = p - 1
        pad_left = pad_total // 2
        pad_right = pad_total - pad_left
    else:
        pad_left = pad_right = 0

    L_pad = L + pad_left + pad_right
    out_len = (L_pad - p) // p + 1           # floor mode, same as max_pool1d
    used = out_len * p                       # elements actually visited

    if pad_left == 0 and used <= L:
        # 'same' padding is a no-op after the floor-mode trim (e.g. p=2 with
        # even L): skip the extra jnp.pad HBM pass entirely.
        x_trim = x[..., :used]
    else:
        right = max(0, used - (pad_left + L))
        x_trim = jnp.pad(
            x, ((0, 0), (0, 0), (pad_left, right)),
            mode="constant", constant_values=0,
        )[..., :used]

    R = N * C
    # Layout plumbing (one fused XLA pass): (R, out_len, p) -> (p, R, out_len)
    # so the tiled last-two block dims are (rows, out_len): sublane/lane dense.
    xw = x_trim.reshape(R, out_len, p).transpose(2, 0, 1)

    br = min(block_rows, R)                  # 8-multiple or full dim
    to = min(tile_out, out_len)              # 128-multiple or full dim
    grid = (pl.cdiv(R, br), pl.cdiv(out_len, to))

    itemsize = jnp.dtype(x.dtype).itemsize
    cost = pl.CostEstimate(
        flops=R * out_len * max(p - 1, 1),
        transcendentals=0,
        bytes_accessed=(R * out_len * p + R * out_len) * itemsize,
    )

    out = pl.pallas_call(
        _maxpool_kernel,
        out_shape=jax.ShapeDtypeStruct((R, out_len), x.dtype),
        grid_spec=pltpu.PrefetchScalarGridSpec(
            num_scalar_prefetch=0,
            grid=grid,
            in_specs=[
                pl.BlockSpec((p, br, to), lambda i, j: (0, i, j)),
            ],
            out_specs=pl.BlockSpec((br, to), lambda i, j: (i, j)),
        ),
        compiler_params=pltpu.CompilerParams(
            dimension_semantics=("parallel", "parallel"),
            vmem_limit_bytes=32 * 1024 * 1024,
        ),
        cost_estimate=cost,
    )(xw)

    return out.reshape(N, C, out_len)


def _reference_max_pool1d(x, pool_size=2, padding="same"):
    """Pure-JAX reference mirroring the PyTorch module, for verification."""
    p = pool_size
    if padding == "same":
        pad_total = p - 1
        pad_left = pad_total // 2
        pad_right = pad_total - pad_left
        x = jnp.pad(x, ((0, 0), (0, 0), (pad_left, pad_right)),
                    mode="constant", constant_values=0)
    L_pad = x.shape[-1]
    out_len = (L_pad - p) // p + 1
    x = x[..., : out_len * p]
    return jnp.max(x.reshape(x.shape[0], x.shape[1], out_len, p), axis=-1)


if __name__ == "__main__":
    key = jax.random.PRNGKey(0)

    # 1) Toy shape consistent with the module (single grid step).
    x1 = jax.random.normal(key, (2, 4, 16), dtype=jnp.float32)
    y1 = jax.block_until_ready(max_pool1d(x1, pool_size=2, padding="same"))
    assert y1.shape == (2, 4, 8), y1.shape
    assert jnp.allclose(y1, _reference_max_pool1d(x1)), "mismatch (toy)"

    # 2) Multi-tile grid (exercises the pipelined 2D tiling path).
    k1, k2 = jax.random.split(key)
    x2 = jax.random.normal(k1, (2, 16, 512), dtype=jnp.float32)
    y2 = jax.block_until_ready(max_pool1d(x2, block_rows=8, tile_out=128))
    assert y2.shape == (2, 16, 256), y2.shape
    assert jnp.allclose(y2, _reference_max_pool1d(x2)), "mismatch (tiled)"

    # 3) Odd length -> exercises the 'same' right-padding path.
    x3 = jax.random.normal(k2, (2, 4, 17), dtype=jnp.float32)
    y3 = jax.block_until_ready(max_pool1d(x3, pool_size=2, padding="same"))
    assert y3.shape == (2, 4, 9), y3.shape
    assert jnp.allclose(y3, _reference_max_pool1d(x3)), "mismatch (odd L)"

    print("KERNEL_OK")
</pallas_src>

<mosaic_0001>
module attributes {stable_mosaic.version = 11 : i64} {
  func.func @_maxpool_kernel(%arg0: i32, %arg1: i32, %arg2: memref<2x8x8xf32, #tpu.memory_space<vmem>>, %arg3: memref<8x8xf32, #tpu.memory_space<vmem>>) attributes {dimension_semantics = [#tpu.dimension_semantics<parallel>, #tpu.dimension_semantics<parallel>], iteration_bounds = array<i64: 1, 1>, scalar_prefetch = 0 : i64, scratch_operands = 0 : i64, tpu.core_type = #tpu.core_type<tc>, window_params = [{transform_indices = @transform_0, window_bounds = array<i64: 2, 8, 8>}, {transform_indices = @transform_1, window_bounds = array<i64: 8, 8>}]} {
    %c0 = arith.constant 0 : index
    %c0_0 = arith.constant 0 : index
    %c0_1 = arith.constant 0 : index
    %0 = vector.load %arg2[%c0, %c0_0, %c0_1] : memref<2x8x8xf32, #tpu.memory_space<vmem>>, vector<1x8x8xf32>
    %1 = vector.shape_cast %0 : vector<1x8x8xf32> to vector<8x8xf32>
    %c1 = arith.constant 1 : index
    %c0_2 = arith.constant 0 : index
    %c0_3 = arith.constant 0 : index
    %2 = vector.load %arg2[%c1, %c0_2, %c0_3] : memref<2x8x8xf32, #tpu.memory_space<vmem>>, vector<1x8x8xf32>
    %3 = vector.shape_cast %2 : vector<1x8x8xf32> to vector<8x8xf32>
    %4 = arith.maximumf %1, %3 : vector<8x8xf32>
    %c0_4 = arith.constant 0 : index
    %c0_5 = arith.constant 0 : index
    %5 = vector.load %arg3[%c0_4, %c0_5] : memref<8x8xf32, #tpu.memory_space<vmem>>, vector<8x8xf32>
    tpu.vector_store %arg3[%c0_4, %c0_5], %4 {strides = array<i32>} : memref<8x8xf32, #tpu.memory_space<vmem>>, vector<8x8xf32>,
    return
  }
  func.func @transform_0(%arg0: i32, %arg1: i32) -> (i32, i32, i32) {
    %c0_i32 = arith.constant 0 : i32
    %c0_i32_0 = arith.constant 0 : i32
    return %c0_i32, %arg0, %arg1 : i32, i32, i32
  }
  func.func @transform_1(%arg0: i32, %arg1: i32) -> (i32, i32) {
    %c0_i32 = arith.constant 0 : i32
    return %arg0, %arg1 : i32, i32
  }
}

</mosaic_0001>

<llo_original>
// kernel: tpu_custom_call.1
$region0: #{tpu_custom_call.1}
  #allocation0 [shape = 'u32[]', space=smem, size = 0x4, offset = 0x4, fixed_abs, tag = 'smem constant byte address 0x4 - core index']
  #allocation1 [shape = 'u32[144,128]{1,0:T(1,128)}', space=vmem, size = 0x12000, scoped, tag = 'internal scratch']
  %s0 = inlined_call_operand.hbm [shape: f32[2,8,8], index: 0, kind: input, shape index: {}]
  %s1 = inlined_call_operand.hbm [shape: f32[8,8], index: 1, kind: output, shape index: {}]
  %s2 = sld [smem:[#allocation0]]
  $region18: #{tpu_custom_call.1} parent=0
    _
  %s4 = ssub.s32 1, %s2
  %s5 = scalar_select 0, %s4, %s2
  $region1: #{tpu_custom_call.1} parent=0
    #allocation2 [shape = 'u8[8192]{0}', space=vmem, size = 0x2000, scoped, tag = 'input window, operand 0, single buffered']
    #allocation3 [shape = 's32[1]{0}', space=sflag, size = 0x4, scoped, tag = 'scoped memory for tpu_custom_call.1']
    #allocation4 [shape = 's32[1]{0}', space=sflag, size = 0x4, scoped, tag = 'scoped memory for tpu_custom_call.1']
    #allocation5 [shape = 'u8[4096]{0}', space=vmem, size = 0x1000, scoped, tag = 'output window, operand 0, single buffered']
    %6 = vsyncpa [#allocation3], 0
    %7 = vsyncpa [#allocation4], 0
    // Predicated region
    $region2: #{tpu_custom_call.1} parent=1 // pred_check
      _
    $region3: #{tpu_custom_call.1} parent=1 // pred_check_branch
      %9 = sbr.rel (0) target = $region5
    $region4: #{tpu_custom_call.1} parent=1 // pred_region
      %s11 = ssub.s32 256, 256
      %12 = vsyncadd [#allocation3], %s11
      %s13 = sshll.u32 [#allocation2], 4
      %s14 = int_to_ptr.vmem [resolvable:$true] %s13
      %19 = dma.hbm_to_vmem [thread:$0]  %s0, 256, %s14, [#allocation3], 128, 128, 8
    $region5: #{tpu_custom_call.1} parent=1 // pred_fallthru
      _
    // Predicated region
    $region6: #{tpu_custom_call.1} parent=1 // pred_check
      _
    $region7: #{tpu_custom_call.1} parent=1 // pred_check_branch
      %21 = sbr.rel (0) target = $region9
    $region8: #{tpu_custom_call.1} parent=1 // pred_region
      %22 = dma.done [#allocation3], 256
    $region9: #{tpu_custom_call.1} parent=1 // pred_fallthru
      _
    %v23 = vld [vmem:[#allocation2] sm:$0xff]
    %s24 = scalar_lea.vmem [#allocation2], 8
    %v25 = vld [vmem:[%s24] sm:$0xff]
    %v26 = vmax.f32 %v23, %v25
    %vm27 = vcmask 64512
    %28 = vst.msk [vmem:[#allocation5] sm:$0xff] %vm27, %v26
    // Predicated region
    $region10: #{tpu_custom_call.1} parent=1 // pred_check
      _
    $region11: #{tpu_custom_call.1} parent=1 // pred_check_branch
      %30 = sbr.rel (0) target = $region13
    $region12: #{tpu_custom_call.1} parent=1 // pred_region
      %s32 = ssub.s32 128, 128
      %33 = vsyncadd [#allocation4], %s32
      %s35 = sshll.u32 [#allocation5], 4
      %s36 = int_to_ptr.vmem [resolvable:$true] %s35
      %38 = dma.vmem_to_hbm [thread:$0]  %s36, 128, %s1, [#allocation4]
    $region13: #{tpu_custom_call.1} parent=1 // pred_fallthru
      _
    // Predicated region
    $region14: #{tpu_custom_call.1} parent=1 // pred_check
      _
    $region15: #{tpu_custom_call.1} parent=1 // pred_check_branch
      %40 = sbr.rel (0) target = $region17
    $region16: #{tpu_custom_call.1} parent=1 // pred_region
      %41 = dma.done [#allocation4], 128
    $region17: #{tpu_custom_call.1} parent=1 // pred_fallthru
      _
    %42 = vsyncpa [#allocation3], 1
    %43 = vsyncpa [#allocation4], 1

</llo_original>
